<compile_context>
chip_gen: v7x
topology: tpu7x:2x2x1
jax: 0.10.0
libtpu: 0.0.40
codegen_flags: <defaults>
</compile_context>

<pallas_src>
import math

import jax
import jax.numpy as jnp
from jax import lax
from jax.experimental import pallas as pl
from jax.experimental.pallas import tpu as pltpu

LANE = 128


def _conv_relu_pool_kernel(x_ref, w_ref, b_ref, z_ref, pooled_ref):
    # x_ref:      (TMp, Kpk)   row-packed im2col rows (bf16),
    #                          TMp = TN*(P*P//R), Kpk = R*9*Cin
    # w_ref:      (Kpk, Cpk)   block-diagonal packed 3x3 conv weight (bf16), Cpk = R*Cout
    # b_ref:      (1, Cpk)     packed bias (f32)
    # z_ref:      (TMp, Cpk)   conv + bias + ReLU, lane-dense bf16 store
    # pooled_ref: (1, TN, Cpk) per-patch mean over the packed spatial rows (f32)
    acc = jnp.dot(x_ref[...], w_ref[...], preferred_element_type=jnp.float32)
    z = jnp.maximum(acc + b_ref[...], 0.0)
    z_ref[...] = z.astype(z_ref.dtype)              # bf16: halves the dominant HBM stream

    tn = pooled_ref.shape[1]
    pp = z.shape[0] // tn                           # packed rows per patch (multiple of 8)
    pooled = jnp.mean(z.reshape(tn, pp, z.shape[1]), axis=1)
    pooled_ref[...] = pooled[None].astype(pooled_ref.dtype)


def _patchify(x, patch_size, overlap):
    # Mirrors: x.unfold(2,P,P//overlap).unfold(3,P,P//overlap)
    #           .permute(0,2,3,1,4,5).reshape(B*npy*npx, C, P, P)
    B, C, H, W = x.shape
    P = patch_size
    stride = P // overlap
    n_py = (H - P) // stride + 1
    n_px = (W - P) // stride + 1
    ys = (jnp.arange(n_py) * stride)[:, None] + jnp.arange(P)[None, :]   # (npy, P)
    xs = (jnp.arange(n_px) * stride)[:, None] + jnp.arange(P)[None, :]   # (npx, P)
    patches = x[:, :, ys, :]                        # (B, C, npy, P, W)
    patches = patches[:, :, :, :, xs]               # (B, C, npy, P, npx, P)
    patches = patches.transpose(0, 2, 4, 1, 3, 5)   # (B, npy, npx, C, P, P)
    return patches.reshape(B * n_py * n_px, C, P, P), n_py, n_px


def _pack_factor(cout, pp):
    """R spatial rows folded into lanes so R*Cout is a multiple of 128 and R | P*P."""
    if cout % LANE == 0:
        return 1
    r = LANE // math.gcd(cout, LANE)
    if r <= pp and pp % r == 0:
        return r
    return 1  # fallback: lane-pad Cout instead (writes some zero lanes)


def _vmem_capacity_bytes():
    """Physical VMEM of the current TPU generation; conservative fallback."""
    try:
        cap = getattr(pltpu.get_tpu_info(), "vmem_capacity_bytes", None)
        if cap:
            return int(cap)
    except Exception:
        pass
    return 64 * 1024 * 1024        # v7x-sized fallback: safe on every generation


def _choose_tiling(n_patches, pp_packed, k_lanes, cpk, vmem_budget_bytes):
    """Patches-per-tile from the VMEM budget.  No artificial MXU row cap.

    Budget math per packed row (double-buffered in/out blocks + f32 intermediates):
      bf16 x block:   2 * (k_lanes * 2 B)
      bf16 z block:   2 * (cpk * 2 B)
      f32 acc/z/tmp:  3 * (cpk * 4 B)
    Weight / bias / pooled blocks are O(100 KB) and ignored.
    """
    per_row = 2 * (k_lanes * 2) + 2 * (cpk * 2) + 3 * (cpk * 4)
    rows = max(pp_packed, vmem_budget_bytes // per_row)
    tn = max(1, rows // pp_packed)
    tn = min(tn, n_patches)

    grid = pl.cdiv(n_patches, tn)
    if n_patches >= 2:
        grid = max(grid, 2)        # >=2 steps: pipeline overlap / feed both v7x TCs
    if grid > 1 and grid % 2:
        grid += 1                  # even grid: balanced split across v7x's 2 TensorCores
    tn = pl.cdiv(n_patches, grid)
    while (tn * pp_packed) % 8:    # sublane-align rows-per-tile
        tn += 1
    grid = pl.cdiv(n_patches, tn)
    if grid > 1 and grid % 2:
        grid += 1                  # pad N with whole (trimmed) tiles to keep grid even
    return tn, grid


def vgg_like_encoder_forward(x, weight, bias, *, patch_size=8, overlap=2,
                             z_layout="NHWC"):
    """Forward of VGG_like_Encoder block 0 with t=0 (no recurrence path).

    Returns (out, z, n_patches_y, n_patches_x).  `out` matches the module
    ((B, Cout, npy, npx), f32).  `z` is returned as bf16, NHWC (N, P, P, Cout)
    by default: the module's NCHW relayout costs a full extra HBM pass over the
    largest tensor; pass z_layout="NCHW" for strict layout parity.
    """
    B, Cin, H, W = x.shape
    P = patch_size
    PP = P * P
    Cout = weight.shape[0]
    K = 9 * Cin

    # ---- glue (plain JAX): early bf16 cast, patch extraction, row-packed im2col ----
    xb = x.astype(jnp.bfloat16)                       # half-width wrapper intermediates
    patches, n_py, n_px = _patchify(xb, P, overlap)   # (N, Cin, P, P)
    N = patches.shape[0]

    xpad = jnp.pad(patches, ((0, 0), (0, 0), (1, 1), (1, 1)))   # conv padding=1
    xpad = xpad.transpose(0, 2, 3, 1)                           # (N, P+2, P+2, Cin)
    cols = [xpad[:, ky:ky + P, kx:kx + P, :]
            for ky in range(3) for kx in range(3)]              # 9 x (N, P, P, Cin)
    xcol = jnp.concatenate(cols, axis=-1).reshape(N * PP, K)    # (M, 9*Cin), bf16
    # TODO(synk): fuse im2col into the kernel (halo-block DMA + in-VMEM column
    # build) to drop this extra XLA pass entirely; it scales with Cin.

    # Row-packing: fold R consecutive spatial rows into the lane dim so the HBM
    # z block is exactly R*Cout lanes wide (multiple of 128, no padded lanes).
    R = _pack_factor(Cout, PP)
    w_col = weight.transpose(2, 3, 1, 0).reshape(K, Cout).astype(jnp.float32)
    if R > 1:
        Cpk = R * Cout
        Kpk = R * K
        w_pk = jnp.kron(jnp.eye(R, dtype=jnp.float32), w_col)   # block-diagonal (Kpk,Cpk)
        b_pk = jnp.tile(bias.astype(jnp.float32), R).reshape(1, Cpk)
        xpk = xcol.reshape(N * PP // R, Kpk)                    # pure reshape (row-major)
    else:
        Cpk = pl.cdiv(Cout, LANE) * LANE
        Kpk = K
        w_pk = jnp.pad(w_col, ((0, 0), (0, Cpk - Cout)))
        b_pk = jnp.pad(bias.astype(jnp.float32), (0, Cpk - Cout)).reshape(1, Cpk)
        xpk = xcol
    w_pk = w_pk.astype(jnp.bfloat16)
    pp_pk = PP // R                                   # packed rows per patch

    # ---- tiling from per-generation VMEM budget ----
    cap = _vmem_capacity_bytes()                      # 128 MiB v5e/v6e, 64 MiB v7x
    budget = cap // 2                                 # ~64 MiB v5e/v6e, ~32 MiB v7x
    k_lanes = pl.cdiv(Kpk, LANE) * LANE
    TN, grid = _choose_tiling(N, pp_pk, k_lanes, Cpk, budget)
    TMp = TN * pp_pk
    Mp = N * pp_pk
    Mp_pad = grid * TMp
    if Mp_pad > Mp:
        # Ragged N: zero-padded patches produce z = ReLU(bias) rows; they are
        # trimmed below and never reach the returned tensors.
        xpk = jnp.pad(xpk, ((0, Mp_pad - Mp), (0, 0)))

    z_pk, pooled = pl.pallas_call(
        _conv_relu_pool_kernel,
        out_shape=(
            jax.ShapeDtypeStruct((Mp_pad, Cpk), jnp.bfloat16),
            jax.ShapeDtypeStruct((grid, TN, Cpk), jnp.float32),
        ),
        grid_spec=pltpu.PrefetchScalarGridSpec(
            num_scalar_prefetch=0,
            grid=(grid,),
            in_specs=[
                pl.BlockSpec((TMp, Kpk), lambda i: (i, 0)),
                pl.BlockSpec((Kpk, Cpk), lambda i: (0, 0)),
                pl.BlockSpec((1, Cpk), lambda i: (0, 0)),
            ],
            out_specs=[
                pl.BlockSpec((TMp, Cpk), lambda i: (i, 0)),
                pl.BlockSpec((1, TN, Cpk), lambda i: (i, 0, 0)),
            ],
        ),
        compiler_params=pltpu.CompilerParams(
            dimension_semantics=("parallel",),
            vmem_limit_bytes=int(cap * 3 // 4),
        ),
    )(xpk, w_pk, b_pk)

    # ---- unpack (cheap: reshapes + leading-dim trims, no relayout) ----
    if R > 1:
        # packed rows are row-major z: (Mp, R*Cout) == (M, Cout) bit-for-bit
        z = z_pk.reshape(-1, Cout)[: N * PP]
        pooled = pooled.reshape(grid * TN, Cpk)[:N].reshape(N, R, Cout).mean(axis=1)
    else:
        z = z_pk[: N * PP, :Cout]
        pooled = pooled.reshape(grid * TN, Cpk)[:N, :Cout]
    z = z.reshape(N, P, P, Cout)                      # lane-dense NHWC
    if z_layout == "NCHW":                            # strict module-layout parity
        z = z.transpose(0, 3, 1, 2)

    out = pooled.reshape(B, n_py, n_px, Cout).transpose(0, 3, 1, 2)
    return out, z, n_py, n_px


def _reference_forward(x, weight, bias, patch_size=8, overlap=2):
    """Pure-JAX/XLA full-f32 reference of the same forward (correctness check)."""
    B = x.shape[0]
    patches, n_py, n_px = _patchify(x, patch_size, overlap)
    z = lax.conv_general_dilated(
        patches, weight, window_strides=(1, 1), padding="SAME",
        dimension_numbers=("NCHW", "OIHW", "NCHW"),
        precision=lax.Precision.HIGHEST,
    )
    z = jnp.maximum(z + bias[None, :, None, None], 0.0)
    pooled = jnp.mean(z, axis=(2, 3))
    out = pooled.reshape(B, n_py, n_px, -1).transpose(0, 3, 1, 2)
    return out, z, n_py, n_px


# TODO(synk): save_vars (torch.save side-effect), recurrence (t>0), extra_conv,
# inpatch_prediction, increasing_patch_size and the loss modules are disabled
# in this default-config instantiation and are not translated.

if __name__ == "__main__":
    key = jax.random.PRNGKey(0)
    kx, kw, kb = jax.random.split(key, 3)

    B, Cin, H, W = 2, 4, 16, 16
    Cout, P, overlap = 32, 8, 2

    x = jax.random.normal(kx, (B, Cin, H, W), dtype=jnp.float32)
    weight = jax.random.normal(kw, (Cout, Cin, 3, 3), dtype=jnp.float32) / math.sqrt(Cin * 9)
    bias = 0.01 * jax.random.normal(kb, (Cout,), dtype=jnp.float32)

    out, z, n_py, n_px = vgg_like_encoder_forward(
        x, weight, bias, patch_size=P, overlap=overlap)
    jax.block_until_ready((out, z))

    out_ref, z_ref, n_py_ref, n_px_ref = _reference_forward(
        x, weight, bias, patch_size=P, overlap=overlap)

    assert (n_py, n_px) == (n_py_ref, n_px_ref)
    assert out.shape == (B, Cout, n_py, n_px), out.shape
    assert z.shape == (B * n_py * n_px, P, P, Cout), z.shape   # NHWC, bf16 (perf path)
    z_ref_nhwc = z_ref.transpose(0, 2, 3, 1)
    # bf16 operands + bf16 z storage (f32 accumulate) vs full-f32 reference -> loose tol.
    assert jnp.allclose(z.astype(jnp.float32), z_ref_nhwc, atol=5e-2, rtol=5e-2)
    assert jnp.allclose(out, out_ref, atol=5e-2, rtol=5e-2)

    print("KERNEL_OK")
</pallas_src>

<mosaic_0001>
module attributes {stable_mosaic.version = 11 : i64} {
  func.func @_conv_relu_pool_kernel(%arg0: i32, %arg1: memref<144x144xbf16, #tpu.memory_space<vmem>>, %arg2: memref<144x128xbf16, #tpu.memory_space<vmem>>, %arg3: memref<1x128xf32, #tpu.memory_space<vmem>>, %arg4: memref<144x128xbf16, #tpu.memory_space<vmem>>, %arg5: memref<1x9x128xf32, #tpu.memory_space<vmem>>) attributes {dimension_semantics = [#tpu.dimension_semantics<parallel>], iteration_bounds = array<i64: 2>, scalar_prefetch = 0 : i64, scratch_operands = 0 : i64, tpu.core_type = #tpu.core_type<tc>, window_params = [{transform_indices = @transform_0, window_bounds = array<i64: 144, 144>}, {pipeline_mode = #tpu.pipeline_mode<synchronous>, transform_indices = @transform_1, window_bounds = array<i64: 144, 128>}, {pipeline_mode = #tpu.pipeline_mode<synchronous>, transform_indices = @transform_2, window_bounds = array<i64: 1, 128>}, {transform_indices = @transform_3, window_bounds = array<i64: 144, 128>}, {transform_indices = @transform_4, window_bounds = array<i64: 1, 9, 128>}]} {
    %c0 = arith.constant 0 : index
    %c0_0 = arith.constant 0 : index
    %0 = vector.load %arg1[%c0, %c0_0] : memref<144x144xbf16, #tpu.memory_space<vmem>>, vector<144x144xbf16>
    %c0_1 = arith.constant 0 : index
    %c0_2 = arith.constant 0 : index
    %1 = vector.load %arg2[%c0_1, %c0_2] : memref<144x128xbf16, #tpu.memory_space<vmem>>, vector<144x128xbf16>
    %cst = arith.constant dense<0.000000e+00> : vector<144x128xf32>
    %2 = tpu.matmul %0, %1, %cst {dimension_numbers = #tpu.dot_dimension_numbers<[1], [0], [0], [1], [0, 0, 1, 1], [], []>} : vector<144x144xbf16>, vector<144x128xbf16>, vector<144x128xf32> -> vector<144x128xf32>
    %c0_3 = arith.constant 0 : index
    %c0_4 = arith.constant 0 : index
    %3 = vector.load %arg3[%c0_3, %c0_4] : memref<1x128xf32, #tpu.memory_space<vmem>>, vector<1x128xf32>
    %4 = vector.broadcast %3 : vector<1x128xf32> to vector<144x128xf32>
    %5 = arith.addf %2, %4 : vector<144x128xf32>
    %cst_5 = arith.constant 0.000000e+00 : f32
    %6 = vector.broadcast %cst_5 : f32 to vector<144x128xf32>
    %7 = arith.maximumf %5, %6 : vector<144x128xf32>
    %8 = arith.truncf %7 : vector<144x128xf32> to vector<144x128xbf16>
    %c0_6 = arith.constant 0 : index
    %c0_7 = arith.constant 0 : index
    %9 = vector.load %arg4[%c0_6, %c0_7] : memref<144x128xbf16, #tpu.memory_space<vmem>>, vector<144x128xbf16>
    tpu.vector_store %arg4[%c0_6, %c0_7], %8 {strides = array<i32>} : memref<144x128xbf16, #tpu.memory_space<vmem>>, vector<144x128xbf16>,
    %10 = vector.shape_cast %7 : vector<144x128xf32> to vector<9x16x128xf32>
    %cst_8 = arith.constant dense<0.000000e+00> : vector<9x128xf32>
    %11 = vector.multi_reduction <add>, %10, %cst_8 [1] : vector<9x16x128xf32> to vector<9x128xf32>
    %cst_9 = arith.constant 1.600000e+01 : f32
    %12 = vector.broadcast %cst_9 : f32 to vector<9x128xf32>
    %13 = arith.divf %11, %12 : vector<9x128xf32>
    %14 = vector.shape_cast %13 : vector<9x128xf32> to vector<1x9x128xf32>
    %c0_10 = arith.constant 0 : index
    %c0_11 = arith.constant 0 : index
    %c0_12 = arith.constant 0 : index
    %15 = vector.load %arg5[%c0_10, %c0_11, %c0_12] : memref<1x9x128xf32, #tpu.memory_space<vmem>>, vector<1x9x128xf32>
    tpu.vector_store %arg5[%c0_10, %c0_11, %c0_12], %14 {strides = array<i32>} : memref<1x9x128xf32, #tpu.memory_space<vmem>>, vector<1x9x128xf32>,
    return
  }
  func.func @transform_0(%arg0: i32) -> (i32, i32) {
    %c0_i32 = arith.constant 0 : i32
    %c0_i32_0 = arith.constant 0 : i32
    return %arg0, %c0_i32 : i32, i32
  }
  func.func @transform_1(%arg0: i32) -> (i32, i32) {
    %c0_i32 = arith.constant 0 : i32
    %c0_i32_0 = arith.constant 0 : i32
    %c0_i32_1 = arith.constant 0 : i32
    return %c0_i32, %c0_i32_0 : i32, i32
  }
  func.func @transform_2(%arg0: i32) -> (i32, i32) {
    %c0_i32 = arith.constant 0 : i32
    %c0_i32_0 = arith.constant 0 : i32
    %c0_i32_1 = arith.constant 0 : i32
    return %c0_i32, %c0_i32_0 : i32, i32
  }
  func.func @transform_3(%arg0: i32) -> (i32, i32) {
    %c0_i32 = arith.constant 0 : i32
    %c0_i32_0 = arith.constant 0 : i32
    return %arg0, %c0_i32 : i32, i32
  }
  func.func @transform_4(%arg0: i32) -> (i32, i32, i32) {
    %c0_i32 = arith.constant 0 : i32
    %c0_i32_0 = arith.constant 0 : i32
    %c0_i32_1 = arith.constant 0 : i32
    return %arg0, %c0_i32, %c0_i32_0 : i32, i32, i32
  }
}

</mosaic_0001>

<llo_original>
// kernel: tpu_custom_call.1
$region0: #{tpu_custom_call.1}
  #allocation0 [shape = 'u32[]', space=smem, size = 0x4, offset = 0x4, fixed_abs, tag = 'smem constant byte address 0x4 - core index']
  #allocation1 [shape = 'u32[144,128]{1,0:T(1,128)}', space=vmem, size = 0x12000, scoped, tag = 'internal scratch']
  %s0 = inlined_call_operand.vmem [shape: bf16[288,144], index: 0, kind: input, shape index: {}]
  %s1 = inlined_call_operand.vmem [shape: bf16[144,128], index: 1, kind: input, shape index: {}]
  %s2 = inlined_call_operand.vmem [shape: f32[1,128], index: 2, kind: input, shape index: {}]
  %s3 = inlined_call_operand.hbm [shape: bf16[288,128], index: 3, kind: output, shape index: {0}]
  %s4 = inlined_call_operand.vmem [shape: f32[2,9,128], index: 4, kind: output, shape index: {1}]
  %5 = xla_tuple %s3, %s4
  %s6 = sld [smem:[#allocation0]]
  $region53: #{tpu_custom_call.1} parent=0
    _
  %s8 = ssub.s32 1, %s6
  %s9 = scalar_select 0, %s8, %s6
  $region1: #{tpu_custom_call.1} parent=0
    #allocation2 [shape = 'u8[73728]{0}', space=vmem, size = 0x12000, scoped, tag = 'output window, operand 0']
    #allocation3 [shape = 's32[2]{0}', space=sflag, size = 0x8, scoped, tag = 'scoped memory for tpu_custom_call.1']
    %10 = vsyncpa [#allocation3], 0
    %s11 = scalar_lea.sflag [#allocation3], 1
    %12 = vsyncpa %s11, 0
    loop: start=0, step=1, limit=4
    $region2: #{tpu_custom_call.1} parent=1 // loop_pre_header
      _
    $region3: #{tpu_custom_call.1} parent=1 // loop_header
      %s14 = sphi 0, %s18
      %p15 = scmp.ge.s32.totalorder %s14, 4
      %s24 = sphi 0, %s26
      %s27 = sphi 0, %s24
      %s28 = sphi 0, %s27
      %s44 = sphi 0, %s28
      %s48 = sphi 0, %s48
      %s50 = sphi 0, %s48
      %s51 = sphi 0, %s50
      %s65 = sphi 0, %s51
      %s69 = sphi 0, %s69
      %s71 = sphi 0, %s69
      %s72 = sphi 0, %s71
      %s86 = sphi 0, %s72
      %s92 = sphi 0, %s94
      %s95 = sphi 0, %s92
      %s96 = sphi 0, %s95
      %s112 = sphi 0, %s96
      %s118 = sphi 0, %s120
      %s121 = sphi 0, %s118
      %s122 = sphi 0, %s121
      %s138 = sphi 0, %s122
    $region4: #{tpu_custom_call.1} parent=1 // loop_header_branch
      %17 = sbr.rel (%p15) target = $region8
    $region5: #{tpu_custom_call.1} parent=1 // loop_body
      %s19 = ssub.s32 %s14, 1
      %s20 = ssub.s32 %s14, 2
      %s21 = sadd.s32 %s14, 1
      %s22 = ssub.s32 %s14, %s21
      %p23 = scmp.eq.s32.totalorder %s22, 0
      %s25 = sadd.s32 %s24, 1
      %s26 = scalar_select %p23, %s24, %s25
      %p29 = pneg %p23
      %p30 = scmp.eq.s32.totalorder %s14, 1
      %p31 = por %p29, %p30
      %p32 = scmp.ne.s32.totalorder %s24, %s27
      %p33 = scmp.eq.s32.totalorder %s14, 0
      %p34 = por %p32, %p33
      %p35 = scmp.ne.s32.totalorder %s24, %s27
      %p36 = scmp.eq.s32.totalorder %s19, 1
      %p37 = por %p35, %p36
      %p38 = scmp.ne.s32.totalorder %s27, %s28
      %p39 = scmp.eq.s32.totalorder %s19, 0
      %p40 = por %p38, %p39
      %p41 = scmp.ne.s32.totalorder %s27, %s28
      %p42 = scmp.eq.s32.totalorder %s20, 1
      %p43 = por %p41, %p42
      %p45 = scmp.ne.s32.totalorder %s28, %s44
      %p46 = scmp.eq.s32.totalorder %s20, 0
      %p47 = por %p45, %p46
      %s49 = sadd.s32 %s48, 1
      %p52 = scmp.eq.s32.totalorder %s14, 1
      %p53 = scmp.ne.s32.totalorder %s48, %s50
      %p54 = scmp.eq.s32.totalorder %s14, 0
      %p55 = por %p53, %p54
      %p56 = scmp.ne.s32.totalorder %s48, %s50
      %p57 = scmp.eq.s32.totalorder %s19, 1
      %p58 = por %p56, %p57
      %p59 = scmp.ne.s32.totalorder %s50, %s51
      %p60 = scmp.eq.s32.totalorder %s19, 0
      %p61 = por %p59, %p60
      %p62 = scmp.ne.s32.totalorder %s50, %s51
      %p63 = scmp.eq.s32.totalorder %s20, 1
      %p64 = por %p62, %p63
      %p66 = scmp.ne.s32.totalorder %s51, %s65
      %p67 = scmp.eq.s32.totalorder %s20, 0
      %p68 = por %p66, %p67
      %s70 = sadd.s32 %s69, 1
      %p73 = scmp.eq.s32.totalorder %s14, 1
      %p74 = scmp.ne.s32.totalorder %s69, %s71
      %p75 = scmp.eq.s32.totalorder %s14, 0
      %p76 = por %p74, %p75
      %p77 = scmp.ne.s32.totalorder %s69, %s71
      %p78 = scmp.eq.s32.totalorder %s19, 1
      %p79 = por %p77, %p78
      %p80 = scmp.ne.s32.totalorder %s71, %s72
      %p81 = scmp.eq.s32.totalorder %s19, 0
      %p82 = por %p80, %p81
      %p83 = scmp.ne.s32.totalorder %s71, %s72
      %p84 = scmp.eq.s32.totalorder %s20, 1
      %p85 = por %p83, %p84
      %p87 = scmp.ne.s32.totalorder %s72, %s86
      %p88 = scmp.eq.s32.totalorder %s20, 0
      %p89 = por %p87, %p88
      %s90 = ssub.s32 %s14, %s21
      %p91 = scmp.eq.s32.totalorder %s90, 0
      %s93 = sadd.s32 %s92, 1
      %s94 = scalar_select %p91, %s92, %s93
      %p97 = pneg %p91
      %p98 = scmp.eq.s32.totalorder %s14, 1
      %p99 = por %p97, %p98
      %p100 = scmp.ne.s32.totalorder %s92, %s95
      %p101 = scmp.eq.s32.totalorder %s14, 0
      %p102 = por %p100, %p101
      %p103 = scmp.ne.s32.totalorder %s92, %s95
      %p104 = scmp.eq.s32.totalorder %s19, 1
      %p105 = por %p103, %p104
      %p106 = scmp.ne.s32.totalorder %s95, %s96
      %p107 = scmp.eq.s32.totalorder %s19, 0
      %p108 = por %p106, %p107
      %p109 = scmp.ne.s32.totalorder %s95, %s96
      %p110 = scmp.eq.s32.totalorder %s20, 1
      %p111 = por %p109, %p110
      %p113 = scmp.ne.s32.totalorder %s96, %s112
      %p114 = scmp.eq.s32.totalorder %s20, 0
      %p115 = por %p113, %p114
      %s116 = ssub.s32 %s14, %s21
      %p117 = scmp.eq.s32.totalorder %s116, 0
      %s119 = sadd.s32 %s118, 1
      %s120 = scalar_select %p117, %s118, %s119
      %p123 = pneg %p117
      %p124 = scmp.eq.s32.totalorder %s14, 1
      %p125 = por %p123, %p124
      %p126 = scmp.ne.s32.totalorder %s118, %s121
      %p127 = scmp.eq.s32.totalorder %s14, 0
      %p128 = por %p126, %p127
      %p129 = scmp.ne.s32.totalorder %s118, %s121
      %p130 = scmp.eq.s32.totalorder %s19, 1
      %p131 = por %p129, %p130
      %p132 = scmp.ne.s32.totalorder %s121, %s122
      %p133 = scmp.eq.s32.totalorder %s19, 0
      %p134 = por %p132, %p133
      %p135 = scmp.ne.s32.totalorder %s121, %s122
      %p136 = scmp.eq.s32.totalorder %s20, 1
      %p137 = por %p135, %p136
      %p139 = scmp.ne.s32.totalorder %s122, %s138
      %p140 = scmp.eq.s32.totalorder %s20, 0
      %p141 = por %p139, %p140
      %p142 = scmp.le.s32.totalorder 1, %s14
      %p143 = scmp.lt.s32.totalorder %s14, 3
      %p144 = pnand %p142, %p143
      %p145 = pneg %p144
      // Predicated region
      $region9: #{tpu_custom_call.1} parent=5 // pred_check
        _
      $region10: #{tpu_custom_call.1} parent=5 // pred_check_branch
        %147 = sbr.rel (%p144) target = $region12
      $region11: #{tpu_custom_call.1} parent=5 // pred_region
        %s148 = ssub.s32 %s14, 1
        // Predicated region
        $region13: #{tpu_custom_call.1} parent=11 // pred_check
          %p149 = pneg %p61
        $region14: #{tpu_custom_call.1} parent=11 // pred_check_branch
          %151 = sbr.rel (%p149) target = $region16
        $region15: #{tpu_custom_call.1} parent=11 // pred_region
          _
        $region16: #{tpu_custom_call.1} parent=11 // pred_fallthru
          _
        // Predicated region
        $region17: #{tpu_custom_call.1} parent=11 // pred_check
          %p152 = pneg %p82
        $region18: #{tpu_custom_call.1} parent=11 // pred_check_branch
          %154 = sbr.rel (%p152) target = $region20
        $region19: #{tpu_custom_call.1} parent=11 // pred_region
          _
        $region20: #{tpu_custom_call.1} parent=11 // pred_fallthru
          _
      $region12: #{tpu_custom_call.1} parent=5 // pred_fallthru
        _
      %p155 = scmp.lt.s32.totalorder %s14, 2
      // Predicated region
      $region21: #{tpu_custom_call.1} parent=5 // pred_check
        %p156 = pneg %p155
      $region22: #{tpu_custom_call.1} parent=5 // pred_check_branch
        %158 = sbr.rel (%p156) target = $region24
      $region23: #{tpu_custom_call.1} parent=5 // pred_region
        // Predicated region
        $region25: #{tpu_custom_call.1} parent=23 // pred_check
          %p159 = pneg %p34
        $region26: #{tpu_custom_call.1} parent=23 // pred_check_branch
          %161 = sbr.rel (%p159) target = $region28
        $region27: #{tpu_custom_call.1} parent=23 // pred_region
          %s162 = smul.u32 18, %s14
          %p163 = scmp.lt.s32.totalorder %s162, 35
          %s164 = scalar_select %p163, %s162, 35
          %s165 = smul.addr %s164, 2
          %s166 = smul.addr %s165, 4
          %s167 = scalar_lea.vmem %s0, %s166
          %s168 = smul.u32 18, %s14
        $region28: #{tpu_custom_call.1} parent=23 // pred_fallthru
          _
      $region24: #{tpu_custom_call.1} parent=5 // pred_fallthru
        _
      %p169 = scmp.le.s32.totalorder 1, %s14
      %p170 = scmp.lt.s32.totalorder %s14, 3
      %p171 = pnand %p169, %p170
      %p172 = pneg %p171
      // Predicated region
      $region29: #{tpu_custom_call.1} parent=5 // pred_check
        _
      $region30: #{tpu_custom_call.1} parent=5 // pred_check_branch
        %174 = sbr.rel (%p171) target = $region32
      $region31: #{tpu_custom_call.1} parent=5 // pred_region
        %s175 = ssub.s32 %s14, 1
        %s176 = smul.u32 18, %s19
        %p177 = scmp.lt.s32.totalorder %s176, 35
        %s178 = scalar_select %p177, %s176, 35
        %s179 = smul.addr %s178, 2
        %s180 = smul.addr %s179, 4
        %s181 = scalar_lea.vmem %s0, %s180
        %p182 = pneg %p40
        %p183 = pneg %p37
        %p184 = pneg %p61
        %p185 = pneg %p58
        %p186 = pneg %p82
        %p187 = pneg %p79
        %p188 = pneg %p108
        %p189 = pneg %p105
        %s190 = sand.u32 %s95, 1
        %s191 = scalar_lea.sflag [#allocation3], %s190
        %s192 = sand.u32 %s95, 1
        %s193 = smul.addr %s192, 72
        %s194 = scalar_lea.vmem [#allocation2], %s193
        %p195 = pneg %p134
        %p196 = pneg %p131
        %p197 = scmp.lt.s32.totalorder %s19, 1
        %s198 = scalar_select %p197, %s19, 1
        %s199 = smul.addr %s198, 2
        %s200 = smul.addr %s199, 8
        %s201 = scalar_lea.vmem %s4, %s200
        %s202 = smul.u32 18, %s19
        %p203 = scmp.lt.s32.totalorder %s202, 35
        %s204 = scalar_select %p203, %s202, 35
        %s205 = smul.addr %s204, 2
        %s206 = smul.addr %s205, 4
        %s207 = scalar_lea.vmem %s0, %s206
        %s208 = smul.u32 18, %s19
        %s209 = smul.u32 18, %s19
        %p210 = scmp.lt.s32.totalorder %s19, 1
        %s211 = scalar_select %p210, %s19, 1
        %s212 = smul.addr %s211, 2
        %s213 = smul.addr %s212, 8
        %s214 = scalar_lea.vmem %s4, %s213
        %v216 = vld [vmem:[%s207] sm:$0xff]
        %v217 = vld [vmem:[%s207 + $0x8] sm:$0xff]
        %v218 = vld [vmem:[%s207 + $0x10] sm:$0xff]
        %v219 = vld [vmem:[%s207 + $0x18] sm:$0xff]
        %v220 = vld [vmem:[%s207 + $0x20] sm:$0xff]
        %v221 = vld [vmem:[%s207 + $0x28] sm:$0xff]
        %v222 = vld [vmem:[%s207 + $0x30] sm:$0xff]
        %v223 = vld [vmem:[%s207 + $0x38] sm:$0xff]
        %v224 = vld [vmem:[%s207 + $0x40] sm:$0xff]
        %v225 = vld [vmem:[%s207 + $0x48] sm:$0xff]
        %v226 = vld [vmem:[%s207 + $0x50] sm:$0xff]
        %v227 = vld [vmem:[%s207 + $0x58] sm:$0xff]
        %v228 = vld [vmem:[%s207 + $0x60] sm:$0xff]
        %v229 = vld [vmem:[%s207 + $0x68] sm:$0xff]
        %v230 = vld [vmem:[%s207 + $0x70] sm:$0xff]
        %v231 = vld [vmem:[%s207 + $0x78] sm:$0xff]
        %v232 = vld [vmem:[%s207 + $0x80] sm:$0xff]
        %v233 = vld [vmem:[%s207 + $0x88] sm:$0xff]
        %v234 = vld [vmem:[%s1] sm:$0xf]
        %v235 = vld [vmem:[%s1 + $0x4] sm:$0xf]
        %v236 = vld [vmem:[%s1 + $0x8] sm:$0xf]
        %v237 = vld [vmem:[%s1 + $0xc] sm:$0xf]
        %v238 = vld [vmem:[%s1 + $0x10] sm:$0xf]
        %v239 = vld [vmem:[%s1 + $0x14] sm:$0xf]
        %v240 = vld [vmem:[%s1 + $0x18] sm:$0xf]
        %v241 = vld [vmem:[%s1 + $0x1c] sm:$0xf]
        %v242 = vld [vmem:[%s1 + $0x20] sm:$0xf]
        %v243 = vld [vmem:[%s1 + $0x24] sm:$0xf]
        %v244 = vld [vmem:[%s1 + $0x28] sm:$0xf]
        %v245 = vld [vmem:[%s1 + $0x2c] sm:$0xf]
        %v246 = vld [vmem:[%s1 + $0x30] sm:$0xf]
        %v247 = vld [vmem:[%s1 + $0x34] sm:$0xf]
        %v248 = vld [vmem:[%s1 + $0x38] sm:$0xf]
        %v249 = vld [vmem:[%s1 + $0x3c] sm:$0xf]
        %v250 = vld [vmem:[%s1 + $0x40] sm:$0xf]
        %v251 = vld [vmem:[%s1 + $0x44] sm:$0xf]
        %v252 = vld [vmem:[%s2] sm:$0x1]
        %v254 = vlaneseq
        %v255 = vshrl.u32 %v254, 7
        %v256 = vsub.s32 0, %v255
        %v257 = vrot.slane %v252, %v256
        %v277 = vunpack.c.l.b16 %v216
        %v278 = vunpack.c.h.b16 %v216
        %v279 = vunpack.c.l.b16 %v217
        %v280 = vunpack.c.h.b16 %v217
        %v281 = vunpack.c.l.b16 %v218
        %v282 = vunpack.c.h.b16 %v218
        %v283 = vunpack.c.l.b16 %v219
        %v284 = vunpack.c.h.b16 %v219
        %v285 = vunpack.c.l.b16 %v220
        %v286 = vunpack.c.h.b16 %v220
        %v287 = vunpack.c.l.b16 %v221
        %v288 = vunpack.c.h.b16 %v221
        %v289 = vunpack.c.l.b16 %v222
        %v290 = vunpack.c.h.b16 %v222
        %v291 = vunpack.c.l.b16 %v223
        %v292 = vunpack.c.h.b16 %v223
        %v293 = vunpack.c.l.b16 %v224
        %v294 = vunpack.c.h.b16 %v224
        %v295 = vunpack.c.l.b16 %v225
        %v296 = vunpack.c.h.b16 %v225
        %v297 = vunpack.c.l.b16 %v226
        %v298 = vunpack.c.h.b16 %v226
        %v299 = vunpack.c.l.b16 %v227
        %v300 = vunpack.c.h.b16 %v227
        %v301 = vunpack.c.l.b16 %v228
        %v302 = vunpack.c.h.b16 %v228
        %v303 = vunpack.c.l.b16 %v229
        %v304 = vunpack.c.h.b16 %v229
        %v305 = vunpack.c.l.b16 %v230
        %v306 = vunpack.c.h.b16 %v230
        %v307 = vunpack.c.l.b16 %v231
        %v308 = vunpack.c.h.b16 %v231
        %v309 = vunpack.c.l.b16 %v232
        %v310 = vunpack.c.h.b16 %v232
        %v311 = vunpack.c.l.b16 %v233
        %v312 = vunpack.c.h.b16 %v233
        %v313 = vpack.c.b16 %v279, %v277
        %v314 = vpack.c.b16 %v280, %v278
        %v315 = vpack.c.b16 %v283, %v281
        %v316 = vpack.c.b16 %v284, %v282
        %v317 = vpack.c.b16 %v287, %v285
        %v318 = vpack.c.b16 %v288, %v286
        %v319 = vpack.c.b16 %v291, %v289
        %v320 = vpack.c.b16 %v292, %v290
        %v321 = vpack.c.b16 %v295, %v293
        %v322 = vpack.c.b16 %v296, %v294
        %v323 = vpack.c.b16 %v299, %v297
        %v324 = vpack.c.b16 %v300, %v298
        %v325 = vpack.c.b16 %v303, %v301
        %v326 = vpack.c.b16 %v304, %v302
        %v327 = vpack.c.b16 %v307, %v305
        %v328 = vpack.c.b16 %v308, %v306
        %v329 = vpack.c.b16 %v311, %v309
        %v330 = vpack.c.b16 %v312, %v310
        %v358 = vunpack.c.l.b16 %v234
        %v359 = vunpack.c.l.b16 %v235
        %v360 = vunpack.c.l.b16 %v236
        %v361 = vunpack.c.l.b16 %v237
        %v362 = vunpack.c.l.b16 %v238
        %v363 = vunpack.c.l.b16 %v239
        %v364 = vunpack.c.l.b16 %v240
        %v365 = vunpack.c.l.b16 %v241
        %v366 = vunpack.c.l.b16 %v242
        %v367 = vunpack.c.l.b16 %v243
        %v368 = vunpack.c.l.b16 %v244
        %v369 = vunpack.c.l.b16 %v245
        %v370 = vunpack.c.l.b16 %v246
        %v371 = vunpack.c.l.b16 %v247
        %v372 = vunpack.c.l.b16 %v248
        %v373 = vunpack.c.l.b16 %v249
        %v374 = vunpack.c.l.b16 %v250
        %v375 = vunpack.c.l.b16 %v251
        %v376 = vpack.c.b16 %v359, %v358
        %v377 = vpack.c.b16 %v361, %v360
        %v378 = vpack.c.b16 %v363, %v362
        %v379 = vpack.c.b16 %v365, %v364
        %v380 = vpack.c.b16 %v367, %v366
        %v381 = vpack.c.b16 %v369, %v368
        %v382 = vpack.c.b16 %v371, %v370
        %v383 = vpack.c.b16 %v373, %v372
        %v384 = vpack.c.b16 %v375, %v374
        %vm394 = vcmask 130048
        %v396 = vsel %vm394, %v314, 0
        %v399 = vsel %vm394, %v316, 0
        %v402 = vsel %vm394, %v318, 0
        %v405 = vsel %vm394, %v320, 0
        %v408 = vsel %vm394, %v322, 0
        %v411 = vsel %vm394, %v324, 0
        %v414 = vsel %vm394, %v326, 0
        %v417 = vsel %vm394, %v328, 0
        %v420 = vsel %vm394, %v330, 0
        %422 = vmatprep.subr.bf16.mxu0 0
        %423 = vmatpush1.bf16.msra.mxu0 %v376
        %424 = vmatprep.subr.bf16.mxu0 0
        %425 = vmatpush1.bf16.msra.mxu0 %v377
        %426 = vmatprep.subr.bf16.mxu0 0
        %427 = vmatpush1.bf16.msra.mxu0 %v378
        %428 = vmatprep.subr.bf16.mxu0 0
        %429 = vmatpush1.bf16.msra.mxu0 %v379
        %430 = vmatprep.subr.bf16.mxu0 0
        %431 = vmatpush1.bf16.msra.mxu0 %v380
        %432 = vmatprep.subr.bf16.mxu0 0
        %433 = vmatpush1.bf16.msra.mxu0 %v381
        %434 = vmatprep.subr.bf16.mxu0 0
        %435 = vmatpush1.bf16.msra.mxu0 %v382
        %436 = vmatprep.subr.bf16.mxu0 0
        %437 = vmatpush1.bf16.msra.mxu0 %v383
        %438 = vmatprep.subr.bf16.mxu0 0
        %439 = vmatpush1.bf16.msra.mxu0 %v384
        %440 = vmatprep.subr.bf16.mxu0 0
        %441 = vmatpush1.bf16.msra.mxu0 0
        %442 = vmatprep.subr.bf16.mxu0 0
        %443 = vmatpush1.bf16.msra.mxu0 0
        %444 = vmatprep.subr.bf16.mxu0 0
        %445 = vmatpush1.bf16.msra.mxu0 0
        %446 = vmatprep.subr.bf16.mxu0 0
        %447 = vmatpush1.bf16.msra.mxu0 0
        %448 = vmatprep.subr.bf16.mxu0 0
        %449 = vmatpush1.bf16.msra.mxu0 0
        %450 = vmatprep.subr.bf16.mxu0 0
        %451 = vmatpush1.bf16.msra.mxu0 0
        %452 = vmatprep.subr.bf16.mxu0 0
        %453 = vmatpush1.bf16.msra.mxu0 0
        %454 = vmatprep.mubr.bf16.mxu0 %v396
        %455 = vmatmul.mubr.bf16.gmra.mrb[0].mxu0 %v313
        %v456 = vpop.f32.mrb[0].mxu0
        %v457 = vadd.f32 %v257, %v456
        %v458 = vpop.f32.mrb[0].mxu0
        %v459 = vpop.f32.mrb[0].mxu0
        %v460 = vadd.f32 %v257, %v459
        %v461 = vpop.f32.mrb[0].mxu0
        %462 = vmatprep.mubr.bf16.mxu0 %v399
        %463 = vmatmul.mubr.bf16.gmra.mrb[0].mxu0 %v315
        %v464 = vpop.f32.mrb[0].mxu0
        %v465 = vadd.f32 %v257, %v464
        %v466 = vpop.f32.mrb[0].mxu0
        %v467 = vpop.f32.mrb[0].mxu0
        %v468 = vadd.f32 %v257, %v467
        %v469 = vpop.f32.mrb[0].mxu0
        %470 = vmatprep.mubr.bf16.mxu0 %v402
        %471 = vmatmul.mubr.bf16.gmra.mrb[0].mxu0 %v317
        %v472 = vpop.f32.mrb[0].mxu0
        %v473 = vadd.f32 %v257, %v472
        %v474 = vpop.f32.mrb[0].mxu0
        %v475 = vpop.f32.mrb[0].mxu0
        %v476 = vadd.f32 %v257, %v475
        %v477 = vpop.f32.mrb[0].mxu0
        %478 = vmatprep.mubr.bf16.mxu0 %v405
        %479 = vmatmul.mubr.bf16.gmra.mrb[0].mxu0 %v319
        %v480 = vpop.f32.mrb[0].mxu0
        %v481 = vadd.f32 %v257, %v480
        %v482 = vpop.f32.mrb[0].mxu0
        %v483 = vpop.f32.mrb[0].mxu0
        %v484 = vadd.f32 %v257, %v483
        %v485 = vpop.f32.mrb[0].mxu0
        %486 = vmatprep.mubr.bf16.mxu0 %v408
        %487 = vmatmul.mubr.bf16.gmra.mrb[0].mxu0 %v321
        %v488 = vpop.f32.mrb[0].mxu0
        %v489 = vadd.f32 %v257, %v488
        %v490 = vpop.f32.mrb[0].mxu0
        %v491 = vpop.f32.mrb[0].mxu0
        %v492 = vadd.f32 %v257, %v491
        %v493 = vpop.f32.mrb[0].mxu0
        %494 = vmatprep.mubr.bf16.mxu0 %v411
        %495 = vmatmul.mubr.bf16.gmra.mrb[0].mxu0 %v323
        %v496 = vpop.f32.mrb[0].mxu0
        %v497 = vadd.f32 %v257, %v496
        %v498 = vpop.f32.mrb[0].mxu0
        %v499 = vpop.f32.mrb[0].mxu0
        %v500 = vadd.f32 %v257, %v499
        %v501 = vpop.f32.mrb[0].mxu0
        %502 = vmatprep.mubr.bf16.mxu0 %v414
        %503 = vmatmul.mubr.bf16.gmra.mrb[0].mxu0 %v325
        %v504 = vpop.f32.mrb[0].mxu0
        %v505 = vadd.f32 %v257, %v504
        %v506 = vpop.f32.mrb[0].mxu0
        %v507 = vpop.f32.mrb[0].mxu0
        %v508 = vadd.f32 %v257, %v507
        %v509 = vpop.f32.mrb[0].mxu0
        %510 = vmatprep.mubr.bf16.mxu0 %v417
        %511 = vmatmul.mubr.bf16.gmra.mrb[0].mxu0 %v327
        %v512 = vpop.f32.mrb[0].mxu0
        %v513 = vadd.f32 %v257, %v512
        %v514 = vpop.f32.mrb[0].mxu0
        %v515 = vpop.f32.mrb[0].mxu0
        %v516 = vadd.f32 %v257, %v515
        %v517 = vpop.f32.mrb[0].mxu0
        %518 = vmatprep.mubr.bf16.mxu0 %v420
        %519 = vmatmul.mubr.bf16.gmra.mrb[0].mxu0 %v329
        %v520 = vpop.f32.mrb[0].mxu0
        %v521 = vadd.f32 %v257, %v520
        %v522 = vpop.f32.mrb[0].mxu0
        %v523 = vpop.f32.mrb[0].mxu0
        %v524 = vadd.f32 %v257, %v523
        %v525 = vpop.f32.mrb[0].mxu0
        %526 = vdwg.mxu0
        %v527 = vmax.f32 %v457, 0.0
        %v528 = vmax.f32 %v460, 0.0
        %v529 = vmax.f32 %v465, 0.0
        %v530 = vmax.f32 %v468, 0.0
        %v531 = vmax.f32 %v473, 0.0
        %v532 = vmax.f32 %v476, 0.0
        %v533 = vmax.f32 %v481, 0.0
        %v534 = vmax.f32 %v484, 0.0
        %v535 = vmax.f32 %v489, 0.0
        %v536 = vmax.f32 %v492, 0.0
        %v537 = vmax.f32 %v497, 0.0
        %v538 = vmax.f32 %v500, 0.0
        %v539 = vmax.f32 %v505, 0.0
        %v540 = vmax.f32 %v508, 0.0
        %v541 = vmax.f32 %v513, 0.0
        %v542 = vmax.f32 %v516, 0.0
        %v543 = vmax.f32 %v521, 0.0
        %v544 = vmax.f32 %v524, 0.0
        %v545 = vpack.c.bf16 %v528, %v527
        %v546 = vpack.c.bf16 %v530, %v529
        %v547 = vpack.c.bf16 %v532, %v531
        %v548 = vpack.c.bf16 %v534, %v533
        %v549 = vpack.c.bf16 %v536, %v535
        %v550 = vpack.c.bf16 %v538, %v537
        %v551 = vpack.c.bf16 %v540, %v539
        %v552 = vpack.c.bf16 %v542, %v541
        %v553 = vpack.c.bf16 %v544, %v543
        %v563 = vunpack.c.l.b16 %v545
        %v564 = vunpack.c.h.b16 %v545
        %v565 = vunpack.c.l.b16 %v546
        %v566 = vunpack.c.h.b16 %v546
        %v567 = vunpack.c.l.b16 %v547
        %v568 = vunpack.c.h.b16 %v547
        %v569 = vunpack.c.l.b16 %v548
        %v570 = vunpack.c.h.b16 %v548
        %v571 = vunpack.c.l.b16 %v549
        %v572 = vunpack.c.h.b16 %v549
        %v573 = vunpack.c.l.b16 %v550
        %v574 = vunpack.c.h.b16 %v550
        %v575 = vunpack.c.l.b16 %v551
        %v576 = vunpack.c.h.b16 %v551
        %v577 = vunpack.c.l.b16 %v552
        %v578 = vunpack.c.h.b16 %v552
        %v579 = vunpack.c.l.b16 %v553
        %v580 = vunpack.c.h.b16 %v553
        %v581 = vpack.c.b16 %v563, %v563
        %v582 = vpack.c.b16 %v564, %v564
        %v583 = vpack.c.b16 %v565, %v565
        %v584 = vpack.c.b16 %v566, %v566
        %v585 = vpack.c.b16 %v567, %v567
        %v586 = vpack.c.b16 %v568, %v568
        %v587 = vpack.c.b16 %v569, %v569
        %v588 = vpack.c.b16 %v570, %v570
        %v589 = vpack.c.b16 %v571, %v571
        %v590 = vpack.c.b16 %v572, %v572
        %v591 = vpack.c.b16 %v573, %v573
        %v592 = vpack.c.b16 %v574, %v574
        %v593 = vpack.c.b16 %v575, %v575
        %v594 = vpack.c.b16 %v576, %v576
        %v595 = vpack.c.b16 %v577, %v577
        %v596 = vpack.c.b16 %v578, %v578
        %v597 = vpack.c.b16 %v579, %v579
        %v598 = vpack.c.b16 %v580, %v580
        %617 = vst [vmem:[%s194] sm:$0xf] %v581
        %618 = vst [vmem:[%s194 + $0x4] sm:$0xf] %v582
        %619 = vst [vmem:[%s194 + $0x8] sm:$0xf] %v583
        %620 = vst [vmem:[%s194 + $0xc] sm:$0xf] %v584
        %621 = vst [vmem:[%s194 + $0x10] sm:$0xf] %v585
        %622 = vst [vmem:[%s194 + $0x14] sm:$0xf] %v586
        %623 = vst [vmem:[%s194 + $0x18] sm:$0xf] %v587
        %624 = vst [vmem:[%s194 + $0x1c] sm:$0xf] %v588
        %625 = vst [vmem:[%s194 + $0x20] sm:$0xf] %v589
        %626 = vst [vmem:[%s194 + $0x24] sm:$0xf] %v590
        %627 = vst [vmem:[%s194 + $0x28] sm:$0xf] %v591
        %628 = vst [vmem:[%s194 + $0x2c] sm:$0xf] %v592
        %629 = vst [vmem:[%s194 + $0x30] sm:$0xf] %v593
        %630 = vst [vmem:[%s194 + $0x34] sm:$0xf] %v594
        %631 = vst [vmem:[%s194 + $0x38] sm:$0xf] %v595
        %632 = vst [vmem:[%s194 + $0x3c] sm:$0xf] %v596
        %633 = vst [vmem:[%s194 + $0x40] sm:$0xf] %v597
        %634 = vst [vmem:[%s194 + $0x44] sm:$0xf] %v598
        %v635 = vadd.f32 %v527, %v528
        %v636 = vrot.slane %v635, 4
        %v637 = vadd.f32 %v635, %v636
        %v638 = vrot.slane %v637, 2
        %v639 = vadd.f32 %v637, %v638
        %v640 = vrot.slane %v639, 1
        %v641 = vadd.f32 %v639, %v640
        %v642 = vadd.f32 %v529, %v530
        %v643 = vrot.slane %v642, 4
        %v644 = vadd.f32 %v642, %v643
        %v645 = vrot.slane %v644, 2
        %v646 = vadd.f32 %v644, %v645
        %v647 = vrot.slane %v646, 1
        %v648 = vadd.f32 %v646, %v647
        %v649 = vadd.f32 %v531, %v532
        %v650 = vrot.slane %v649, 4
        %v651 = vadd.f32 %v649, %v650
        %v652 = vrot.slane %v651, 2
        %v653 = vadd.f32 %v651, %v652
        %v654 = vrot.slane %v653, 1
        %v655 = vadd.f32 %v653, %v654
        %v656 = vadd.f32 %v533, %v534
        %v657 = vrot.slane %v656, 4
        %v658 = vadd.f32 %v656, %v657
        %v659 = vrot.slane %v658, 2
        %v660 = vadd.f32 %v658, %v659
        %v661 = vrot.slane %v660, 1
        %v662 = vadd.f32 %v660, %v661
        %v663 = vadd.f32 %v535, %v536
        %v664 = vrot.slane %v663, 4
        %v665 = vadd.f32 %v663, %v664
        %v666 = vrot.slane %v665, 2
        %v667 = vadd.f32 %v665, %v666
        %v668 = vrot.slane %v667, 1
        %v669 = vadd.f32 %v667, %v668
        %v670 = vadd.f32 %v537, %v538
        %v671 = vrot.slane %v670, 4
        %v672 = vadd.f32 %v670, %v671
        %v673 = vrot.slane %v672, 2
        %v674 = vadd.f32 %v672, %v673
        %v675 = vrot.slane %v674, 1
        %v676 = vadd.f32 %v674, %v675
        %v677 = vadd.f32 %v539, %v540
        %v678 = vrot.slane %v677, 4
        %v679 = vadd.f32 %v677, %v678
        %v680 = vrot.slane %v679, 2
        %v681 = vadd.f32 %v679, %v680
        %v682 = vrot.slane %v681, 1
        %v683 = vadd.f32 %v681, %v682
        %v684 = vadd.f32 %v541, %v542
        %v685 = vrot.slane %v684, 4
        %v686 = vadd.f32 %v684, %v685
        %v687 = vrot.slane %v686, 2
        %v688 = vadd.f32 %v686, %v687
        %v689 = vrot.slane %v688, 1
        %v690 = vadd.f32 %v688, %v689
        %v691 = vadd.f32 %v543, %v544
        %v692 = vrot.slane %v691, 4
        %v693 = vadd.f32 %v691, %v692
        %v694 = vrot.slane %v693, 2
        %v695 = vadd.f32 %v693, %v694
        %v696 = vrot.slane %v695, 1
        %v697 = vadd.f32 %v695, %v696
        %v698 = vrcp.pop 16.0
        %v699 = vmul.f32 %v641, %v698
        %v700 = vmul.f32 %v648, %v698
        %v701 = vmul.f32 %v655, %v698
        %v702 = vmul.f32 %v662, %v698
        %v703 = vmul.f32 %v669, %v698
        %v704 = vmul.f32 %v676, %v698
        %v705 = vmul.f32 %v683, %v698
        %v706 = vmul.f32 %v690, %v698
        %v707 = vmul.f32 %v697, %v698
        %vm717 = vcmask 1041409
        %v718 = vsel %vm717, %v700, %v699
        %vm719 = vcmask 1042434
        %v720 = vsel %vm719, %v701, %v718
        %vm721 = vcmask 1043459
        %v722 = vsel %vm721, %v702, %v720
        %vm723 = vcmask 1044484
        %v724 = vsel %vm723, %v703, %v722
        %vm725 = vcmask 1045509
        %v726 = vsel %vm725, %v704, %v724
        %vm727 = vcmask 1046534
        %v728 = vsel %vm727, %v705, %v726
        %vm729 = vcmask 1047559
        %v730 = vsel %vm729, %v706, %v728
        %733 = vst [vmem:[%s214] sm:$0xff] %v730
        %734 = vst [vmem:[%s214 + $0x8] sm:$0x1] %v707
        %s735 = sand.u32 %s95, 1
        %s736 = scalar_lea.sflag [#allocation3], %s735
        %s737 = sand.u32 %s95, 1
        %s738 = smul.addr %s737, 72
        %s739 = scalar_lea.vmem [#allocation2], %s738
        %p740 = scmp.lt.s32.totalorder %s19, 1
        %s741 = scalar_select %p740, %s19, 1
        %s742 = smul.addr %s741, 2
        %s743 = smul.addr %s742, 8
        %s744 = scalar_lea.vmem %s4, %s743
        // Predicated region
        $region33: #{tpu_custom_call.1} parent=31 // pred_check
          %p745 = pneg %p105
        $region34: #{tpu_custom_call.1} parent=31 // pred_check_branch
          %747 = sbr.rel (%p745) target = $region36
        $region35: #{tpu_custom_call.1} parent=31 // pred_region
          %s748 = smul.u32 18, %s19
          %s750 = ssub.s32 1152, 1152
          %751 = vsyncadd %s736, %s750
          %s752 = smul.addr %s748, 64
          %s753 = scalar_lea.hbm %s3, %s752
          %s754 = sshll.u32 %s739, 4
          %s755 = int_to_ptr.vmem [resolvable:$true] %s754
          %760 = dma.vmem_to_hbm [thread:$0]  %s755, 1152, %s753, %s736, 64, 64, 4
        $region36: #{tpu_custom_call.1} parent=31 // pred_fallthru
          _
        // Predicated region
        $region37: #{tpu_custom_call.1} parent=31 // pred_check
          %p761 = pneg %p131
        $region38: #{tpu_custom_call.1} parent=31 // pred_check_branch
          %763 = sbr.rel (%p761) target = $region40
        $region39: #{tpu_custom_call.1} parent=31 // pred_region
          _
        $region40: #{tpu_custom_call.1} parent=31 // pred_fallthru
          _
      $region32: #{tpu_custom_call.1} parent=5 // pred_fallthru
        _
      %p764 = scmp.le.s32.totalorder 2, %s14
      // Predicated region
      $region41: #{tpu_custom_call.1} parent=5 // pred_check
        %p765 = pneg %p764
      $region42: #{tpu_custom_call.1} parent=5 // pred_check_branch
        %767 = sbr.rel (%p765) target = $region44
      $region43: #{tpu_custom_call.1} parent=5 // pred_region
        %s768 = ssub.s32 %s14, 2
        // Predicated region
        $region45: #{tpu_custom_call.1} parent=43 // pred_check
          %p769 = pneg %p111
        $region46: #{tpu_custom_call.1} parent=43 // pred_check_branch
          %771 = sbr.rel (%p769) target = $region48
        $region47: #{tpu_custom_call.1} parent=43 // pred_region
          %s772 = sand.u32 %s96, 1
          %s773 = scalar_lea.sflag [#allocation3], %s772
          %s774 = sand.u32 %s96, 1
          %s775 = smul.addr %s774, 72
          %s776 = scalar_lea.vmem [#allocation2], %s775
          %777 = dma.done %s773, 1152
        $region48: #{tpu_custom_call.1} parent=43 // pred_fallthru
          _
        // Predicated region
        $region49: #{tpu_custom_call.1} parent=43 // pred_check
          %p778 = pneg %p137
        $region50: #{tpu_custom_call.1} parent=43 // pred_check_branch
          %780 = sbr.rel (%p778) target = $region52
        $region51: #{tpu_custom_call.1} parent=43 // pred_region
          %p781 = scmp.lt.s32.totalorder %s20, 1
          %s782 = scalar_select %p781, %s20, 1
          %s783 = smul.addr %s782, 2
          %s784 = smul.addr %s783, 8
          %s785 = scalar_lea.vmem %s4, %s784
        $region52: #{tpu_custom_call.1} parent=43 // pred_fallthru
          _
      $region44: #{tpu_custom_call.1} parent=5 // pred_fallthru
        _
    $region6: #{tpu_custom_call.1} parent=1 // loop_footer
      %s18 = sadd.s32 1, %s14
    $region7: #{tpu_custom_call.1} parent=1 // loop_footer_branch
      %13 = sbr.rel target = $region3
    $region8: #{tpu_custom_call.1} parent=1 // loop_exit
      _
    %786 = vsyncpa [#allocation3], 1
    %s787 = scalar_lea.sflag [#allocation3], 1
    %788 = vsyncpa %s787, 1

</llo_original>
